<compile_context>
chip_gen: v7x
topology: tpu7x:2x2x1
jax: 0.10.0
libtpu: 0.0.40
codegen_flags: <defaults>
</compile_context>

<pallas_src>
import jax
import jax.numpy as jnp
from jax.experimental import pallas as pl
from jax.experimental.pallas import tpu as pltpu


def policy_kernel(x_ref, w1_ref, b1_ref, w2_ref, b2_ref, w3t_ref, b3_ref, o_ref):
    x = x_ref[...]                       # [TB, in_dim]
    w1 = w1_ref[...]                     # [in_dim, hidden]
    in_dim, hidden = w1.shape
    out_dim = o_ref.shape[1]

    # ---- layer 1: tiny contraction (K = in_dim) -> VPU broadcast-FMAs -------
    acc1 = x[:, 0:1] * w1[0:1, :] + b1_ref[...]      # [TB, hidden]
    for k in range(1, in_dim):                        # static, unrolled
        acc1 = acc1 + x[:, k:k + 1] * w1[k:k + 1, :]
    h1 = jnp.maximum(acc1, 0.0)

    # ---- layer 2: hidden x hidden -> MXU -------------------------------------
    h2 = jnp.dot(h1, w2_ref[...], preferred_element_type=jnp.float32)
    h2 = jnp.maximum(h2 + b2_ref[...], 0.0)

    # ---- layer 3: tiny output width (N = out_dim) -> VPU mul + XLU reduce ----
    w3t = w3t_ref[...]                   # [out_dim, hidden]
    if out_dim <= 8:
        cols = [jnp.sum(h2 * w3t[j:j + 1, :], axis=-1, keepdims=True)
                for j in range(out_dim)]
        out = cols[0] if out_dim == 1 else jnp.concatenate(cols, axis=-1)
    else:  # generic fallback: wide heads go back to the MXU
        out = jnp.dot(h2, w3t.T, preferred_element_type=jnp.float32)

    out = out + b3_ref[...]
    o_ref[...] = jnp.tanh(out).astype(o_ref.dtype)


def _round_up(x, m):
    return ((x + m - 1) // m) * m


def policy_net_forward(s, w1, b1, w2, b2, w3, b3, *, tile_b=512):
    """s: [B, input_dim] float32 -> [B, output_dim] float32."""
    B, in_dim = s.shape
    hidden = w1.shape[1]
    out_dim = w3.shape[1]

    # Tile size: multiple of 8 (sublane rule), capped at `tile_b`; sized well
    # under the v7x 64 MiB VMEM / 32 MiB scoped default even double-buffered.
    tb = min(tile_b, _round_up(B, 8))
    padded_b = _round_up(B, tb)
    if padded_b != B:
        s = jnp.pad(s, ((0, padded_b - B), (0, 0)))

    w3_t = w3.T  # [out_dim, hidden]: lane-contiguous rows for the VPU path

    vmem = pltpu.MemorySpace.VMEM
    resident = lambda a: pl.BlockSpec(a.shape, lambda i: (0, 0), memory_space=vmem)

    grid = (padded_b // tb,)
    in_specs = [
        pl.BlockSpec((tb, in_dim), lambda i: (i, 0), memory_space=vmem),  # x: tiled
        resident(w1), resident(b1),
        resident(w2), resident(b2),
        resident(w3_t), resident(b3),
    ]
    out_specs = pl.BlockSpec((tb, out_dim), lambda i: (i, 0), memory_space=vmem)
    # TODO(synk): for very large B a lane-dense ([1, B]) output layout would
    # avoid masked 1-of-128-lane stores; kept [B, 1] here to match the module.

    flops = 2 * padded_b * (in_dim * hidden + hidden * hidden + hidden * out_dim)
    bytes_accessed = 4 * (
        padded_b * (in_dim + out_dim)
        + in_dim * hidden + hidden * hidden + hidden * out_dim
        + 2 * hidden + out_dim
    )

    out = pl.pallas_call(
        policy_kernel,
        out_shape=jax.ShapeDtypeStruct((padded_b, out_dim), jnp.float32),
        grid=grid,
        in_specs=in_specs,
        out_specs=out_specs,
        compiler_params=pltpu.CompilerParams(
            dimension_semantics=("parallel",)),
        cost_estimate=pl.CostEstimate(
            flops=flops,
            transcendentals=padded_b * out_dim,
            bytes_accessed=bytes_accessed),
    )(s, w1, b1, w2, b2, w3_t, b3)

    return out[:B] if padded_b != B else out


def init_params(key, input_dim=4, hidden_dim=64, output_dim=1):
    """Deterministic PyTorch-Linear-style (uniform) init, weights as [in, out]."""
    ks = jax.random.split(key, 6)

    def linear(kw, kb, fan_in, fan_out):
        bound = 1.0 / jnp.sqrt(fan_in)
        w = jax.random.uniform(kw, (fan_in, fan_out), jnp.float32, -bound, bound)
        b = jax.random.uniform(kb, (1, fan_out), jnp.float32, -bound, bound)
        return w, b

    w1, b1 = linear(ks[0], ks[1], input_dim, hidden_dim)
    w2, b2 = linear(ks[2], ks[3], hidden_dim, hidden_dim)
    w3, b3 = linear(ks[4], ks[5], hidden_dim, output_dim)
    return w1, b1, w2, b2, w3, b3


def reference_forward(s, w1, b1, w2, b2, w3, b3):
    h1 = jnp.maximum(s @ w1 + b1, 0.0)
    h2 = jnp.maximum(h1 @ w2 + b2, 0.0)
    return jnp.tanh(h2 @ w3 + b3)


if __name__ == "__main__":
    key = jax.random.PRNGKey(0)
    k_params, k_x = jax.random.split(key)

    input_dim, hidden_dim, output_dim = 4, 64, 1
    batch = 8

    params = init_params(k_params, input_dim, hidden_dim, output_dim)
    s = jax.random.normal(k_x, (batch, input_dim), jnp.float32)

    out = policy_net_forward(s, *params)
    out = jax.block_until_ready(out)

    ref = reference_forward(s, *params)
    assert out.shape == (batch, output_dim)
    assert jnp.allclose(out, ref, atol=1e-5, rtol=1e-5), "mismatch vs reference"

    # Exercise a multi-tile grid with a ragged tail (B not a multiple of TILE_B).
    s_big = jax.random.normal(k_x, (300, input_dim), jnp.float32)
    out_big = jax.block_until_ready(policy_net_forward(s_big, *params, tile_b=128))
    ref_big = reference_forward(s_big, *params)
    assert out_big.shape == (300, output_dim)
    assert jnp.allclose(out_big, ref_big, atol=1e-5, rtol=1e-5), "tail-tile mismatch"

    print("KERNEL_OK")
</pallas_src>

<mosaic_0001>
module attributes {stable_mosaic.version = 11 : i64} {
  func.func @policy_kernel(%arg0: i32, %arg1: memref<8x4xf32, #tpu.memory_space<vmem>>, %arg2: memref<4x64xf32, #tpu.memory_space<vmem>>, %arg3: memref<1x64xf32, #tpu.memory_space<vmem>>, %arg4: memref<64x64xf32, #tpu.memory_space<vmem>>, %arg5: memref<1x64xf32, #tpu.memory_space<vmem>>, %arg6: memref<1x64xf32, #tpu.memory_space<vmem>>, %arg7: memref<1x1xf32, #tpu.memory_space<vmem>>, %arg8: memref<8x1xf32, #tpu.memory_space<vmem>>) attributes {dimension_semantics = [#tpu.dimension_semantics<parallel>], iteration_bounds = array<i64: 1>, scalar_prefetch = 0 : i64, scratch_operands = 0 : i64, tpu.core_type = #tpu.core_type<tc>, window_params = [{transform_indices = @transform_0, window_bounds = array<i64: 8, 4>}, {pipeline_mode = #tpu.pipeline_mode<synchronous>, transform_indices = @transform_1, window_bounds = array<i64: 4, 64>}, {pipeline_mode = #tpu.pipeline_mode<synchronous>, transform_indices = @transform_2, window_bounds = array<i64: 1, 64>}, {pipeline_mode = #tpu.pipeline_mode<synchronous>, transform_indices = @transform_3, window_bounds = array<i64: 64, 64>}, {pipeline_mode = #tpu.pipeline_mode<synchronous>, transform_indices = @transform_4, window_bounds = array<i64: 1, 64>}, {pipeline_mode = #tpu.pipeline_mode<synchronous>, transform_indices = @transform_5, window_bounds = array<i64: 1, 64>}, {pipeline_mode = #tpu.pipeline_mode<synchronous>, transform_indices = @transform_6, window_bounds = array<i64: 1, 1>}, {transform_indices = @transform_7, window_bounds = array<i64: 8, 1>}]} {
    %c0 = arith.constant 0 : index
    %c0_0 = arith.constant 0 : index
    %0 = vector.load %arg1[%c0, %c0_0] : memref<8x4xf32, #tpu.memory_space<vmem>>, vector<8x4xf32>
    %c0_1 = arith.constant 0 : index
    %c0_2 = arith.constant 0 : index
    %1 = vector.load %arg2[%c0_1, %c0_2] : memref<4x64xf32, #tpu.memory_space<vmem>>, vector<4x64xf32>
    %2 = vector.extract_strided_slice %0 {offsets = [0, 0], sizes = [8, 1], strides = [1, 1]} : vector<8x4xf32> to vector<8x1xf32>
    %3 = vector.extract_strided_slice %1 {offsets = [0, 0], sizes = [1, 64], strides = [1, 1]} : vector<4x64xf32> to vector<1x64xf32>
    %4 = vector.broadcast %2 : vector<8x1xf32> to vector<8x64xf32>
    %5 = vector.broadcast %3 : vector<1x64xf32> to vector<8x64xf32>
    %6 = arith.mulf %4, %5 : vector<8x64xf32>
    %c0_3 = arith.constant 0 : index
    %c0_4 = arith.constant 0 : index
    %7 = vector.load %arg3[%c0_3, %c0_4] : memref<1x64xf32, #tpu.memory_space<vmem>>, vector<1x64xf32>
    %8 = vector.broadcast %7 : vector<1x64xf32> to vector<8x64xf32>
    %9 = arith.addf %6, %8 : vector<8x64xf32>
    %10 = vector.extract_strided_slice %0 {offsets = [0, 1], sizes = [8, 1], strides = [1, 1]} : vector<8x4xf32> to vector<8x1xf32>
    %11 = vector.extract_strided_slice %1 {offsets = [1, 0], sizes = [1, 64], strides = [1, 1]} : vector<4x64xf32> to vector<1x64xf32>
    %12 = vector.broadcast %10 : vector<8x1xf32> to vector<8x64xf32>
    %13 = vector.broadcast %11 : vector<1x64xf32> to vector<8x64xf32>
    %14 = arith.mulf %12, %13 : vector<8x64xf32>
    %15 = arith.addf %9, %14 : vector<8x64xf32>
    %16 = vector.extract_strided_slice %0 {offsets = [0, 2], sizes = [8, 1], strides = [1, 1]} : vector<8x4xf32> to vector<8x1xf32>
    %17 = vector.extract_strided_slice %1 {offsets = [2, 0], sizes = [1, 64], strides = [1, 1]} : vector<4x64xf32> to vector<1x64xf32>
    %18 = vector.broadcast %16 : vector<8x1xf32> to vector<8x64xf32>
    %19 = vector.broadcast %17 : vector<1x64xf32> to vector<8x64xf32>
    %20 = arith.mulf %18, %19 : vector<8x64xf32>
    %21 = arith.addf %15, %20 : vector<8x64xf32>
    %22 = vector.extract_strided_slice %0 {offsets = [0, 3], sizes = [8, 1], strides = [1, 1]} : vector<8x4xf32> to vector<8x1xf32>
    %23 = vector.extract_strided_slice %1 {offsets = [3, 0], sizes = [1, 64], strides = [1, 1]} : vector<4x64xf32> to vector<1x64xf32>
    %24 = vector.broadcast %22 : vector<8x1xf32> to vector<8x64xf32>
    %25 = vector.broadcast %23 : vector<1x64xf32> to vector<8x64xf32>
    %26 = arith.mulf %24, %25 : vector<8x64xf32>
    %27 = arith.addf %21, %26 : vector<8x64xf32>
    %cst = arith.constant 0.000000e+00 : f32
    %28 = vector.broadcast %cst : f32 to vector<8x64xf32>
    %29 = arith.maximumf %27, %28 : vector<8x64xf32>
    %c0_5 = arith.constant 0 : index
    %c0_6 = arith.constant 0 : index
    %30 = vector.load %arg4[%c0_5, %c0_6] : memref<64x64xf32, #tpu.memory_space<vmem>>, vector<64x64xf32>
    %cst_7 = arith.constant dense<0.000000e+00> : vector<8x64xf32>
    %31 = tpu.matmul %29, %30, %cst_7 {dimension_numbers = #tpu.dot_dimension_numbers<[1], [0], [0], [1], [0, 0, 1, 1], [], []>} : vector<8x64xf32>, vector<64x64xf32>, vector<8x64xf32> -> vector<8x64xf32>
    %c0_8 = arith.constant 0 : index
    %c0_9 = arith.constant 0 : index
    %32 = vector.load %arg5[%c0_8, %c0_9] : memref<1x64xf32, #tpu.memory_space<vmem>>, vector<1x64xf32>
    %33 = vector.broadcast %32 : vector<1x64xf32> to vector<8x64xf32>
    %34 = arith.addf %31, %33 : vector<8x64xf32>
    %cst_10 = arith.constant 0.000000e+00 : f32
    %35 = vector.broadcast %cst_10 : f32 to vector<8x64xf32>
    %36 = arith.maximumf %34, %35 : vector<8x64xf32>
    %c0_11 = arith.constant 0 : index
    %c0_12 = arith.constant 0 : index
    %37 = vector.load %arg6[%c0_11, %c0_12] : memref<1x64xf32, #tpu.memory_space<vmem>>, vector<1x64xf32>
    %38 = vector.broadcast %37 : vector<1x64xf32> to vector<8x64xf32>
    %39 = arith.mulf %36, %38 : vector<8x64xf32>
    %cst_13 = arith.constant dense<0.000000e+00> : vector<8xf32>
    %40 = vector.multi_reduction <add>, %39, %cst_13 [1] : vector<8x64xf32> to vector<8xf32>
    %41 = vector.shape_cast %40 : vector<8xf32> to vector<8x1xf32>
    %c0_14 = arith.constant 0 : index
    %c0_15 = arith.constant 0 : index
    %42 = vector.load %arg7[%c0_14, %c0_15] : memref<1x1xf32, #tpu.memory_space<vmem>>, vector<1x1xf32>
    %43 = vector.broadcast %42 : vector<1x1xf32> to vector<8x1xf32>
    %44 = arith.addf %41, %43 : vector<8x1xf32>
    %45 = math.tanh %44 : vector<8x1xf32>
    %c0_16 = arith.constant 0 : index
    %c0_17 = arith.constant 0 : index
    %46 = vector.load %arg8[%c0_16, %c0_17] : memref<8x1xf32, #tpu.memory_space<vmem>>, vector<8x1xf32>
    tpu.vector_store %arg8[%c0_16, %c0_17], %45 {strides = array<i32>} : memref<8x1xf32, #tpu.memory_space<vmem>>, vector<8x1xf32>,
    return
  }
  func.func @transform_0(%arg0: i32) -> (i32, i32) {
    %c0_i32 = arith.constant 0 : i32
    %c0_i32_0 = arith.constant 0 : i32
    return %arg0, %c0_i32 : i32, i32
  }
  func.func @transform_1(%arg0: i32) -> (i32, i32) {
    %c0_i32 = arith.constant 0 : i32
    %c0_i32_0 = arith.constant 0 : i32
    %c0_i32_1 = arith.constant 0 : i32
    return %c0_i32, %c0_i32_0 : i32, i32
  }
  func.func @transform_2(%arg0: i32) -> (i32, i32) {
    %c0_i32 = arith.constant 0 : i32
    %c0_i32_0 = arith.constant 0 : i32
    %c0_i32_1 = arith.constant 0 : i32
    return %c0_i32, %c0_i32_0 : i32, i32
  }
  func.func @transform_3(%arg0: i32) -> (i32, i32) {
    %c0_i32 = arith.constant 0 : i32
    %c0_i32_0 = arith.constant 0 : i32
    %c0_i32_1 = arith.constant 0 : i32
    return %c0_i32, %c0_i32_0 : i32, i32
  }
  func.func @transform_4(%arg0: i32) -> (i32, i32) {
    %c0_i32 = arith.constant 0 : i32
    %c0_i32_0 = arith.constant 0 : i32
    %c0_i32_1 = arith.constant 0 : i32
    return %c0_i32, %c0_i32_0 : i32, i32
  }
  func.func @transform_5(%arg0: i32) -> (i32, i32) {
    %c0_i32 = arith.constant 0 : i32
    %c0_i32_0 = arith.constant 0 : i32
    %c0_i32_1 = arith.constant 0 : i32
    return %c0_i32, %c0_i32_0 : i32, i32
  }
  func.func @transform_6(%arg0: i32) -> (i32, i32) {
    %c0_i32 = arith.constant 0 : i32
    %c0_i32_0 = arith.constant 0 : i32
    %c0_i32_1 = arith.constant 0 : i32
    return %c0_i32, %c0_i32_0 : i32, i32
  }
  func.func @transform_7(%arg0: i32) -> (i32, i32) {
    %c0_i32 = arith.constant 0 : i32
    %c0_i32_0 = arith.constant 0 : i32
    return %arg0, %c0_i32 : i32, i32
  }
}

</mosaic_0001>

<llo_original>
// kernel: tpu_custom_call.1
$region0: #{tpu_custom_call.1}
  #allocation0 [shape = 'u32[]', space=smem, size = 0x4, offset = 0x4, fixed_abs, tag = 'smem constant byte address 0x4 - core index']
  #allocation1 [shape = 'u32[144,128]{1,0:T(1,128)}', space=vmem, size = 0x12000, scoped, tag = 'internal scratch']
  #allocation2 [shape = 'f32[1,1]{1,0:T(1,128)S(1)}', space=vmem, size = 0x200, scoped, tag = 'scoped memory for tpu_custom_call.1']
  %s0 = inlined_call_operand.vmem [shape: f32[8,4], index: 0, kind: input, shape index: {}]
  %s1 = inlined_call_operand.vmem [shape: f32[4,64], index: 1, kind: input, shape index: {}]
  %s2 = inlined_call_operand.vmem [shape: f32[1,64], index: 2, kind: input, shape index: {}]
  %s3 = inlined_call_operand.hbm [shape: f32[64,64], index: 3, kind: input, shape index: {}]
  %s4 = inlined_call_operand.vmem [shape: f32[1,64], index: 4, kind: input, shape index: {}]
  %s5 = inlined_call_operand.vmem [shape: f32[1,64], index: 5, kind: input, shape index: {}]
  %s6 = inlined_call_operand.<no memory space> [shape: f32[1,1], index: 6, kind: input, shape index: {}]
  %s7 = inlined_call_operand.vmem [shape: f32[8,1], index: 7, kind: output, shape index: {}]
  %s8 = sld [smem:[#allocation0]]
  $region42: #{tpu_custom_call.1} parent=0
    _
  %s10 = ssub.s32 1, %s8
  %s11 = scalar_select 0, %s10, %s8
  %v12 = vstv %s6
  %13 = vst [vmem:[#allocation2] sm:$0x1] %v12
  $region1: #{tpu_custom_call.1} parent=0
    #allocation3 [shape = 'u8[32768]{0}', space=vmem, size = 0x8000, scoped, tag = 'input window, operand 3, single buffered']
    #allocation4 [shape = 's32[1]{0}', space=sflag, size = 0x4, scoped, tag = 'scoped memory for tpu_custom_call.1']
    %14 = vsyncpa [#allocation4], 0
    // Predicated region
    $region2: #{tpu_custom_call.1} parent=1 // pred_check
      _
    $region3: #{tpu_custom_call.1} parent=1 // pred_check_branch
      %16 = sbr.rel (0) target = $region5
    $region4: #{tpu_custom_call.1} parent=1 // pred_region
      _
    $region5: #{tpu_custom_call.1} parent=1 // pred_fallthru
      _
    // Predicated region
    $region6: #{tpu_custom_call.1} parent=1 // pred_check
      _
    $region7: #{tpu_custom_call.1} parent=1 // pred_check_branch
      %18 = sbr.rel (0) target = $region9
    $region8: #{tpu_custom_call.1} parent=1 // pred_region
      _
    $region9: #{tpu_custom_call.1} parent=1 // pred_fallthru
      _
    // Predicated region
    $region10: #{tpu_custom_call.1} parent=1 // pred_check
      _
    $region11: #{tpu_custom_call.1} parent=1 // pred_check_branch
      %20 = sbr.rel (0) target = $region13
    $region12: #{tpu_custom_call.1} parent=1 // pred_region
      _
    $region13: #{tpu_custom_call.1} parent=1 // pred_fallthru
      _
    // Predicated region
    $region14: #{tpu_custom_call.1} parent=1 // pred_check
      _
    $region15: #{tpu_custom_call.1} parent=1 // pred_check_branch
      %22 = sbr.rel (0) target = $region17
    $region16: #{tpu_custom_call.1} parent=1 // pred_region
      %s24 = ssub.s32 1024, 1024
      %25 = vsyncadd [#allocation4], %s24
      %s26 = sshll.u32 [#allocation3], 4
      %s27 = int_to_ptr.vmem [resolvable:$true] %s26
      %32 = dma.hbm_to_vmem [thread:$0]  %s3, 1024, %s27, [#allocation4], 128, 128, 8
    $region17: #{tpu_custom_call.1} parent=1 // pred_fallthru
      _
    // Predicated region
    $region18: #{tpu_custom_call.1} parent=1 // pred_check
      _
    $region19: #{tpu_custom_call.1} parent=1 // pred_check_branch
      %34 = sbr.rel (0) target = $region21
    $region20: #{tpu_custom_call.1} parent=1 // pred_region
      _
    $region21: #{tpu_custom_call.1} parent=1 // pred_fallthru
      _
    // Predicated region
    $region22: #{tpu_custom_call.1} parent=1 // pred_check
      _
    $region23: #{tpu_custom_call.1} parent=1 // pred_check_branch
      %36 = sbr.rel (0) target = $region25
    $region24: #{tpu_custom_call.1} parent=1 // pred_region
      _
    $region25: #{tpu_custom_call.1} parent=1 // pred_fallthru
      _
    // Predicated region
    $region26: #{tpu_custom_call.1} parent=1 // pred_check
      _
    $region27: #{tpu_custom_call.1} parent=1 // pred_check_branch
      %38 = sbr.rel (0) target = $region29
    $region28: #{tpu_custom_call.1} parent=1 // pred_region
      _
    $region29: #{tpu_custom_call.1} parent=1 // pred_fallthru
      _
    // Predicated region
    $region30: #{tpu_custom_call.1} parent=1 // pred_check
      _
    $region31: #{tpu_custom_call.1} parent=1 // pred_check_branch
      %40 = sbr.rel (0) target = $region33
    $region32: #{tpu_custom_call.1} parent=1 // pred_region
      %41 = dma.done [#allocation4], 1024
    $region33: #{tpu_custom_call.1} parent=1 // pred_fallthru
      _
    %v42 = vld [vmem:[%s0] sm:$0xff]
    %v43 = vld [vmem:[%s1] sm:$0xf]
    %45 = vset.pattern.permute.xlu0 0
    %46 = vperm.xlu0 %45, %v42
    %v47 = vpop.permute.xlu0 %46
    %v49 = vlaneseq
    %v50 = vshrl.u32 %v49, 7
    %v51 = vsub.s32 0, %v50
    %v52 = vrot.slane %v43, %v51
    %v53 = vmul.f32 %v47, %v52
    %v54 = vld [vmem:[%s2] sm:$0x1]
    %v56 = vlaneseq
    %v57 = vshrl.u32 %v56, 7
    %v58 = vsub.s32 0, %v57
    %v59 = vrot.slane %v54, %v58
    %v61 = vadd.f32 %v53, %v59
    %62 = vset.pattern.permute.xlu0 1
    %63 = vperm.xlu0 %62, %v42
    %v64 = vpop.permute.xlu0 %63
    %v66 = vlaneseq
    %v67 = vshrl.u32 %v66, 7
    %v68 = vsub.s32 1, %v67
    %v69 = vrot.slane %v43, %v68
    %v70 = vmul.f32 %v64, %v69
    %v71 = vadd.f32 %v61, %v70
    %72 = vset.pattern.permute.xlu0 2
    %73 = vperm.xlu0 %72, %v42
    %v74 = vpop.permute.xlu0 %73
    %v76 = vlaneseq
    %v77 = vshrl.u32 %v76, 7
    %v78 = vsub.s32 2, %v77
    %v79 = vrot.slane %v43, %v78
    %v80 = vmul.f32 %v74, %v79
    %v81 = vadd.f32 %v71, %v80
    %82 = vset.pattern.permute.xlu0 3
    %83 = vperm.xlu0 %82, %v42
    %v84 = vpop.permute.xlu0 %83
    %v86 = vlaneseq
    %v87 = vshrl.u32 %v86, 7
    %v88 = vsub.s32 3, %v87
    %v89 = vrot.slane %v43, %v88
    %v90 = vmul.f32 %v84, %v89
    %v91 = vadd.f32 %v81, %v90
    %v92 = vmax.f32 %v91, 0.0
    %v93 = vld [vmem:[#allocation3] sm:$0xff]
    %v94 = vld [vmem:[#allocation3 + $0x8] sm:$0xff]
    %v95 = vld [vmem:[#allocation3 + $0x10] sm:$0xff]
    %v96 = vld [vmem:[#allocation3 + $0x18] sm:$0xff]
    %v97 = vld [vmem:[#allocation3 + $0x20] sm:$0xff]
    %v98 = vld [vmem:[#allocation3 + $0x28] sm:$0xff]
    %v99 = vld [vmem:[#allocation3 + $0x30] sm:$0xff]
    %v100 = vld [vmem:[#allocation3 + $0x38] sm:$0xff]
    %v101 = vld [vmem:[%s4] sm:$0x1]
    %v103 = vlaneseq
    %v104 = vshrl.u32 %v103, 7
    %v105 = vsub.s32 0, %v104
    %v106 = vrot.slane %v101, %v105
    %vm108 = vcmask 523264
    %v110 = vsel %vm108, %v92, 0
    %112 = vmatprep.subr.mxu0 0.0
    %113 = vmatpush1.msra.mxu0 %v93
    %114 = vmatprep.subr.mxu0 0.0
    %115 = vmatpush1.msra.mxu0 %v94
    %116 = vmatprep.subr.mxu0 0.0
    %117 = vmatpush1.msra.mxu0 %v95
    %118 = vmatprep.subr.mxu0 0.0
    %119 = vmatpush1.msra.mxu0 %v96
    %120 = vmatprep.subr.mxu0 0.0
    %121 = vmatpush1.msra.mxu0 %v97
    %122 = vmatprep.subr.mxu0 0.0
    %123 = vmatpush1.msra.mxu0 %v98
    %124 = vmatprep.subr.mxu0 0.0
    %125 = vmatpush1.msra.mxu0 %v99
    %126 = vmatprep.subr.mxu0 0.0
    %127 = vmatpush1.msra.mxu0 %v100
    %128 = vmatprep.subr.mxu0 0.0
    %129 = vmatpush1.msra.mxu0 0.0
    %130 = vmatprep.subr.mxu0 0.0
    %131 = vmatpush1.msra.mxu0 0.0
    %132 = vmatprep.subr.mxu0 0.0
    %133 = vmatpush1.msra.mxu0 0.0
    %134 = vmatprep.subr.mxu0 0.0
    %135 = vmatpush1.msra.mxu0 0.0
    %136 = vmatprep.subr.mxu0 0.0
    %137 = vmatpush1.msra.mxu0 0.0
    %138 = vmatprep.subr.mxu0 0.0
    %139 = vmatpush1.msra.mxu0 0.0
    %140 = vmatprep.subr.mxu0 0.0
    %141 = vmatpush1.msra.mxu0 0.0
    %142 = vmatprep.subr.mxu0 0.0
    %143 = vmatpush1.msra.mxu0 0.0
    %144 = vmatprep.subr.mxu0 0.0
    %145 = vmatpush1.msra.mxu0 0.0
    %146 = vmatprep.subr.mxu0 0.0
    %147 = vmatpush1.msra.mxu0 0.0
    %148 = vmatprep.subr.mxu0 0.0
    %149 = vmatpush1.msra.mxu0 0.0
    %150 = vmatprep.subr.mxu0 0.0
    %151 = vmatpush1.msra.mxu0 0.0
    %152 = vmatprep.subr.mxu0 0.0
    %153 = vmatpush1.msra.mxu0 0.0
    %154 = vmatprep.subr.mxu0 0.0
    %155 = vmatpush1.msra.mxu0 0.0
    %156 = vmatprep.subr.mxu0 0.0
    %157 = vmatpush1.msra.mxu0 0.0
    %158 = vmatprep.subr.mxu0 0.0
    %159 = vmatpush1.msra.mxu0 0.0
    %160 = vmatprep.subr.mxu0 0.0
    %161 = vmatpush1.msra.mxu0 0.0
    %162 = vmatprep.subr.mxu0 0.0
    %163 = vmatpush1.msra.mxu0 0.0
    %164 = vmatprep.subr.mxu0 0.0
    %165 = vmatpush1.msra.mxu0 0.0
    %166 = vmatprep.subr.mxu0 0.0
    %167 = vmatpush1.msra.mxu0 0.0
    %168 = vmatprep.subr.mxu0 0.0
    %169 = vmatpush1.msra.mxu0 0.0
    %170 = vmatprep.subr.mxu0 0.0
    %171 = vmatpush1.msra.mxu0 0.0
    %172 = vmatprep.subr.mxu0 0.0
    %173 = vmatpush1.msra.mxu0 0.0
    %174 = vmatprep.subr.mxu0 0.0
    %175 = vmatpush1.msra.mxu0 0.0
    %176 = vmatprep.mubr.f32.mxu0 0.0
    %177 = vmatmul.mubr.f32.gmra.mrb[0].mxu0 %v110
    %v178 = vpop.f32.mrb[0].mxu0
    %v179 = vadd.f32 %v106, %v178
    %v180 = vpop.f32.mrb[0].mxu0
    %181 = vdwg.mxu0
    %v182 = vmax.f32 %v179, 0.0
    %v183 = vld [vmem:[%s5] sm:$0x1]
    %v185 = vlaneseq
    %v186 = vshrl.u32 %v185, 7
    %v187 = vsub.s32 0, %v186
    %v188 = vrot.slane %v183, %v187
    %v190 = vmul.f32 %v182, %v188
    %v191 = vsel %vm108, %v190, 0.0
    %192 = vadd.xlane.f32.xlu0 %v191
    %v193 = vpop.xlane.xlu0 %192
    %v194 = vld [vmem:[#allocation2] sm:$0x1]
    %v196 = vlaneseq
    %v197 = vshrl.u32 %v196, 7
    %v198 = vsub.s32 0, %v197
    %v199 = vrot.slane %v194, %v198
    %v201 = vadd.f32 %v193, %v199
    %v202 = vtanh.pop %v201
    %vm203 = vcmask 7168
    %204 = vst.msk [vmem:[%s7] sm:$0xff] %vm203, %v202
    // Predicated region
    $region34: #{tpu_custom_call.1} parent=1 // pred_check
      _
    $region35: #{tpu_custom_call.1} parent=1 // pred_check_branch
      %206 = sbr.rel (0) target = $region37
    $region36: #{tpu_custom_call.1} parent=1 // pred_region
      _
    $region37: #{tpu_custom_call.1} parent=1 // pred_fallthru
      _
    // Predicated region
    $region38: #{tpu_custom_call.1} parent=1 // pred_check
      _
    $region39: #{tpu_custom_call.1} parent=1 // pred_check_branch
      %208 = sbr.rel (0) target = $region41
    $region40: #{tpu_custom_call.1} parent=1 // pred_region
      _
    $region41: #{tpu_custom_call.1} parent=1 // pred_fallthru
      _
    %209 = vsyncpa [#allocation4], 1

</llo_original>
